<compile_context>
chip_gen: v7x
topology: tpu7x:2x2x1
jax: 0.10.0
libtpu: 0.0.40
codegen_flags: <defaults>
</compile_context>

<pallas_src>
import functools
import math

import jax
import jax.numpy as jnp
from jax.experimental import pallas as pl
from jax.experimental.pallas import tpu as pltpu


def _argmax_dim0_kernel(x_ref, o_ref, max_ref, idx_ref, *,
                        n_total, block_n, needs_mask, is_float):
    """One grid step: fold `block_n` slices of dim 0 into the running (max, argmax).

    x_ref  : (block_n, tr, tc)  input tile, native dtype
    o_ref  : (1, tr, tc) int32  output tile (written once, on the last reduction step)
    max_ref: (tr, tc)           running max (native dtype), resident across the reduction axis
    idx_ref: (tr, tc) int32     running argmax, resident across the reduction axis
    """
    n = pl.program_id(1)
    base = n * block_n

    # ---- intra-block reduction held in vregs; one VMEM load per slice ----
    run_max = x_ref[0]
    run_idx = jnp.zeros(run_max.shape, jnp.int32)
    for k in range(1, block_n):
        cur = x_ref[k]
        upd = cur > run_max
        if is_float:
            # torch/jnp semantics: NaN is treated as the maximum; first NaN wins.
            upd = upd | (jnp.isnan(cur) & (~jnp.isnan(run_max)))
        if needs_mask:
            # last reduction block may be partial; ignore padded slices.
            upd = upd & ((base + k) < n_total)
        run_max = jnp.where(upd, cur, run_max)
        run_idx = jnp.where(upd, k, run_idx)

    # ---- combine with the running accumulators (once per grid step) ----
    @pl.when(n == 0)
    def _():
        max_ref[...] = run_max
        idx_ref[...] = run_idx          # base == 0 on the first block

    @pl.when(n > 0)
    def _():
        prev = max_ref[...]
        upd = run_max > prev            # strict '>' keeps the earlier (first) index on ties
        if is_float:
            upd = upd | (jnp.isnan(run_max) & (~jnp.isnan(prev)))
        max_ref[...] = jnp.where(upd, run_max, prev)
        idx_ref[...] = jnp.where(upd, run_idx + base, idx_ref[...])

    # ---- finalize: single lane-dense store of the output tile ----
    @pl.when(n == pl.num_programs(1) - 1)
    def _():
        o_ref[0] = idx_ref[...]


def _pick_lane_dim(m):
    """Largest lane-dense (multiple-of-128) factor of m from a preferred set."""
    for c in (1024, 512, 256, 128):
        if m % c == 0:
            return c
    return m  # not lane-alignable; single (possibly masked) tile — small inputs only


def _pick_row_tile(r, max_rows):
    """Row tile: full R if it fits, else the largest multiple-of-8 divisor <= max_rows."""
    if r <= max_rows:
        return r
    t = (max_rows // 8) * 8
    while t >= 8:
        if r % t == 0:
            return t
        t -= 8
    return r  # fallback: full rows (satisfies the (8,128) rule via 'equal full dim')


def argmax_dim0_keepdim(x):
    """Equivalent of torch.argmax(x, 0, keepdim=True); output dtype int32."""
    n_total = x.shape[0]
    rest = x.shape[1:]
    m = math.prod(rest) if rest else 1

    # Re-factor trailing dims into a lane-dense [R, C] view (valid because the
    # reduction over dim 0 is elementwise over trailing coordinates).
    c = _pick_lane_dim(m)
    r = m // c
    x3 = x.reshape(n_total, r, c)

    itemsize = jnp.dtype(x.dtype).itemsize
    block_n = min(n_total, 16)                      # dim-0 slices folded per grid step
    vmem_budget = 2 * 1024 * 1024                   # ~2 MiB input tile (x2 for double-buffer)
    max_rows = max(1, vmem_budget // (block_n * c * itemsize))
    tr = _pick_row_tile(r, max_rows)

    grid = (r // tr, pl.cdiv(n_total, block_n))     # reduction axis LAST
    needs_mask = (n_total % block_n) != 0
    is_float = bool(jnp.issubdtype(x.dtype, jnp.floating))

    kernel = functools.partial(
        _argmax_dim0_kernel,
        n_total=n_total, block_n=block_n,
        needs_mask=needs_mask, is_float=is_float)

    out = pl.pallas_call(
        kernel,
        out_shape=jax.ShapeDtypeStruct((1, r, c), jnp.int32),
        grid_spec=pltpu.PrefetchScalarGridSpec(
            num_scalar_prefetch=0,
            grid=grid,
            in_specs=[pl.BlockSpec((block_n, tr, c), lambda j, n: (n, j, 0))],
            out_specs=pl.BlockSpec((1, tr, c), lambda j, n: (0, j, 0)),
            scratch_shapes=[
                pltpu.VMEM((tr, c), x.dtype),       # running max, native dtype
                pltpu.VMEM((tr, c), jnp.int32),     # running argmax
            ],
        ),
        compiler_params=pltpu.CompilerParams(
            dimension_semantics=("parallel", "arbitrary"),
        ),
    )(x3)

    return out.reshape((1,) + tuple(rest))


if __name__ == "__main__":
    key = jax.random.PRNGKey(0)
    k1, k2 = jax.random.split(key)

    # Case 1: small 4-D input — exercises the lane-dense re-factoring and the
    # single-step reduction path. Exact match vs jnp.argmax (both first-occurrence).
    x1 = jax.random.normal(k1, (8, 4, 16, 32), dtype=jnp.float32)
    o1 = jax.block_until_ready(argmax_dim0_keepdim(x1))
    r1 = jnp.argmax(x1, axis=0, keepdims=True).astype(jnp.int32)
    assert o1.shape == (1, 4, 16, 32) and o1.dtype == jnp.int32
    assert bool(jnp.all(o1 == r1))

    # Case 2: dim-0 size not a multiple of the reduction block (37 = 2*16 + 5),
    # bf16 input (native-dtype running max), multi-step reduction grid.
    x2 = jax.random.normal(k2, (37, 3, 640), dtype=jnp.bfloat16)
    o2 = jax.block_until_ready(argmax_dim0_keepdim(x2))
    assert o2.shape == (1, 3, 640) and o2.dtype == jnp.int32
    assert bool(jnp.all((o2 >= 0) & (o2 < 37)))
    picked = jnp.take_along_axis(x2, o2, axis=0)            # tie-agnostic check
    assert bool(jnp.all(picked == jnp.max(x2, axis=0, keepdims=True)))

    print("KERNEL_OK")
</pallas_src>

<mosaic_0001>
module attributes {stable_mosaic.version = 11 : i64} {
  func.func @_argmax_dim0_kernel(%arg0: i32, %arg1: i32, %arg2: memref<8x2x1024xf32, #tpu.memory_space<vmem>>, %arg3: memref<1x2x1024xi32, #tpu.memory_space<vmem>>, %arg4: memref<2x1024xf32, #tpu.memory_space<vmem>>, %arg5: memref<2x1024xi32, #tpu.memory_space<vmem>>) attributes {dimension_semantics = [#tpu.dimension_semantics<parallel>, #tpu.dimension_semantics<arbitrary>], iteration_bounds = array<i64: 1, 1>, scalar_prefetch = 0 : i64, scratch_operands = 2 : i64, tpu.core_type = #tpu.core_type<tc>, window_params = [{transform_indices = @transform_0, window_bounds = array<i64: 8, 2, 1024>}, {transform_indices = @transform_1, window_bounds = array<i64: 1, 2, 1024>}]} {
    %c8_i32 = arith.constant 8 : i32
    %0 = arith.muli %arg1, %c8_i32 : i32
    %c0 = arith.constant 0 : index
    %c0_0 = arith.constant 0 : index
    %c0_1 = arith.constant 0 : index
    %1 = vector.load %arg2[%c0, %c0_0, %c0_1] : memref<8x2x1024xf32, #tpu.memory_space<vmem>>, vector<1x2x1024xf32>
    %2 = vector.shape_cast %1 : vector<1x2x1024xf32> to vector<2x1024xf32>
    %c0_i32 = arith.constant 0 : i32
    %3 = vector.broadcast %c0_i32 : i32 to vector<2x1024xi32>
    %c1 = arith.constant 1 : index
    %c0_2 = arith.constant 0 : index
    %c0_3 = arith.constant 0 : index
    %4 = vector.load %arg2[%c1, %c0_2, %c0_3] : memref<8x2x1024xf32, #tpu.memory_space<vmem>>, vector<1x2x1024xf32>
    %5 = vector.shape_cast %4 : vector<1x2x1024xf32> to vector<2x1024xf32>
    %6 = arith.cmpf ogt, %5, %2 : vector<2x1024xf32>
    %7 = arith.cmpf one, %5, %5 : vector<2x1024xf32>
    %8 = arith.cmpf one, %2, %2 : vector<2x1024xf32>
    %cst = arith.constant dense<true> : vector<2x1024xi1>
    %9 = arith.xori %8, %cst : vector<2x1024xi1>
    %10 = arith.andi %7, %9 : vector<2x1024xi1>
    %11 = arith.ori %6, %10 : vector<2x1024xi1>
    %12 = arith.select %11, %5, %2 : vector<2x1024xi1>, vector<2x1024xf32>
    %c1_i32 = arith.constant 1 : i32
    %13 = vector.broadcast %c1_i32 : i32 to vector<2x1024xi32>
    %14 = arith.select %11, %13, %3 : vector<2x1024xi1>, vector<2x1024xi32>
    %c2 = arith.constant 2 : index
    %c0_4 = arith.constant 0 : index
    %c0_5 = arith.constant 0 : index
    %15 = vector.load %arg2[%c2, %c0_4, %c0_5] : memref<8x2x1024xf32, #tpu.memory_space<vmem>>, vector<1x2x1024xf32>
    %16 = vector.shape_cast %15 : vector<1x2x1024xf32> to vector<2x1024xf32>
    %17 = arith.cmpf ogt, %16, %12 : vector<2x1024xf32>
    %18 = arith.cmpf one, %16, %16 : vector<2x1024xf32>
    %19 = arith.cmpf one, %12, %12 : vector<2x1024xf32>
    %cst_6 = arith.constant dense<true> : vector<2x1024xi1>
    %20 = arith.xori %19, %cst_6 : vector<2x1024xi1>
    %21 = arith.andi %18, %20 : vector<2x1024xi1>
    %22 = arith.ori %17, %21 : vector<2x1024xi1>
    %23 = arith.select %22, %16, %12 : vector<2x1024xi1>, vector<2x1024xf32>
    %c2_i32 = arith.constant 2 : i32
    %24 = vector.broadcast %c2_i32 : i32 to vector<2x1024xi32>
    %25 = arith.select %22, %24, %14 : vector<2x1024xi1>, vector<2x1024xi32>
    %c3 = arith.constant 3 : index
    %c0_7 = arith.constant 0 : index
    %c0_8 = arith.constant 0 : index
    %26 = vector.load %arg2[%c3, %c0_7, %c0_8] : memref<8x2x1024xf32, #tpu.memory_space<vmem>>, vector<1x2x1024xf32>
    %27 = vector.shape_cast %26 : vector<1x2x1024xf32> to vector<2x1024xf32>
    %28 = arith.cmpf ogt, %27, %23 : vector<2x1024xf32>
    %29 = arith.cmpf one, %27, %27 : vector<2x1024xf32>
    %30 = arith.cmpf one, %23, %23 : vector<2x1024xf32>
    %cst_9 = arith.constant dense<true> : vector<2x1024xi1>
    %31 = arith.xori %30, %cst_9 : vector<2x1024xi1>
    %32 = arith.andi %29, %31 : vector<2x1024xi1>
    %33 = arith.ori %28, %32 : vector<2x1024xi1>
    %34 = arith.select %33, %27, %23 : vector<2x1024xi1>, vector<2x1024xf32>
    %c3_i32 = arith.constant 3 : i32
    %35 = vector.broadcast %c3_i32 : i32 to vector<2x1024xi32>
    %36 = arith.select %33, %35, %25 : vector<2x1024xi1>, vector<2x1024xi32>
    %c4 = arith.constant 4 : index
    %c0_10 = arith.constant 0 : index
    %c0_11 = arith.constant 0 : index
    %37 = vector.load %arg2[%c4, %c0_10, %c0_11] : memref<8x2x1024xf32, #tpu.memory_space<vmem>>, vector<1x2x1024xf32>
    %38 = vector.shape_cast %37 : vector<1x2x1024xf32> to vector<2x1024xf32>
    %39 = arith.cmpf ogt, %38, %34 : vector<2x1024xf32>
    %40 = arith.cmpf one, %38, %38 : vector<2x1024xf32>
    %41 = arith.cmpf one, %34, %34 : vector<2x1024xf32>
    %cst_12 = arith.constant dense<true> : vector<2x1024xi1>
    %42 = arith.xori %41, %cst_12 : vector<2x1024xi1>
    %43 = arith.andi %40, %42 : vector<2x1024xi1>
    %44 = arith.ori %39, %43 : vector<2x1024xi1>
    %45 = arith.select %44, %38, %34 : vector<2x1024xi1>, vector<2x1024xf32>
    %c4_i32 = arith.constant 4 : i32
    %46 = vector.broadcast %c4_i32 : i32 to vector<2x1024xi32>
    %47 = arith.select %44, %46, %36 : vector<2x1024xi1>, vector<2x1024xi32>
    %c5 = arith.constant 5 : index
    %c0_13 = arith.constant 0 : index
    %c0_14 = arith.constant 0 : index
    %48 = vector.load %arg2[%c5, %c0_13, %c0_14] : memref<8x2x1024xf32, #tpu.memory_space<vmem>>, vector<1x2x1024xf32>
    %49 = vector.shape_cast %48 : vector<1x2x1024xf32> to vector<2x1024xf32>
    %50 = arith.cmpf ogt, %49, %45 : vector<2x1024xf32>
    %51 = arith.cmpf one, %49, %49 : vector<2x1024xf32>
    %52 = arith.cmpf one, %45, %45 : vector<2x1024xf32>
    %cst_15 = arith.constant dense<true> : vector<2x1024xi1>
    %53 = arith.xori %52, %cst_15 : vector<2x1024xi1>
    %54 = arith.andi %51, %53 : vector<2x1024xi1>
    %55 = arith.ori %50, %54 : vector<2x1024xi1>
    %56 = arith.select %55, %49, %45 : vector<2x1024xi1>, vector<2x1024xf32>
    %c5_i32 = arith.constant 5 : i32
    %57 = vector.broadcast %c5_i32 : i32 to vector<2x1024xi32>
    %58 = arith.select %55, %57, %47 : vector<2x1024xi1>, vector<2x1024xi32>
    %c6 = arith.constant 6 : index
    %c0_16 = arith.constant 0 : index
    %c0_17 = arith.constant 0 : index
    %59 = vector.load %arg2[%c6, %c0_16, %c0_17] : memref<8x2x1024xf32, #tpu.memory_space<vmem>>, vector<1x2x1024xf32>
    %60 = vector.shape_cast %59 : vector<1x2x1024xf32> to vector<2x1024xf32>
    %61 = arith.cmpf ogt, %60, %56 : vector<2x1024xf32>
    %62 = arith.cmpf one, %60, %60 : vector<2x1024xf32>
    %63 = arith.cmpf one, %56, %56 : vector<2x1024xf32>
    %cst_18 = arith.constant dense<true> : vector<2x1024xi1>
    %64 = arith.xori %63, %cst_18 : vector<2x1024xi1>
    %65 = arith.andi %62, %64 : vector<2x1024xi1>
    %66 = arith.ori %61, %65 : vector<2x1024xi1>
    %67 = arith.select %66, %60, %56 : vector<2x1024xi1>, vector<2x1024xf32>
    %c6_i32 = arith.constant 6 : i32
    %68 = vector.broadcast %c6_i32 : i32 to vector<2x1024xi32>
    %69 = arith.select %66, %68, %58 : vector<2x1024xi1>, vector<2x1024xi32>
    %c7 = arith.constant 7 : index
    %c0_19 = arith.constant 0 : index
    %c0_20 = arith.constant 0 : index
    %70 = vector.load %arg2[%c7, %c0_19, %c0_20] : memref<8x2x1024xf32, #tpu.memory_space<vmem>>, vector<1x2x1024xf32>
    %71 = vector.shape_cast %70 : vector<1x2x1024xf32> to vector<2x1024xf32>
    %72 = arith.cmpf ogt, %71, %67 : vector<2x1024xf32>
    %73 = arith.cmpf one, %71, %71 : vector<2x1024xf32>
    %74 = arith.cmpf one, %67, %67 : vector<2x1024xf32>
    %cst_21 = arith.constant dense<true> : vector<2x1024xi1>
    %75 = arith.xori %74, %cst_21 : vector<2x1024xi1>
    %76 = arith.andi %73, %75 : vector<2x1024xi1>
    %77 = arith.ori %72, %76 : vector<2x1024xi1>
    %78 = arith.select %77, %71, %67 : vector<2x1024xi1>, vector<2x1024xf32>
    %c7_i32 = arith.constant 7 : i32
    %79 = vector.broadcast %c7_i32 : i32 to vector<2x1024xi32>
    %80 = arith.select %77, %79, %69 : vector<2x1024xi1>, vector<2x1024xi32>
    %c0_i32_22 = arith.constant 0 : i32
    %81 = arith.cmpi eq, %arg1, %c0_i32_22 : i32
    %82 = arith.extui %81 : i1 to i32
    %c0_i32_23 = arith.constant 0 : i32
    %83 = arith.cmpi ne, %82, %c0_i32_23 : i32
    scf.if %83 {
      %c0_28 = arith.constant 0 : index
      %c0_29 = arith.constant 0 : index
      %90 = vector.load %arg4[%c0_28, %c0_29] : memref<2x1024xf32, #tpu.memory_space<vmem>>, vector<2x1024xf32>
      tpu.vector_store %arg4[%c0_28, %c0_29], %78 {strides = array<i32>} : memref<2x1024xf32, #tpu.memory_space<vmem>>, vector<2x1024xf32>,
      %c0_30 = arith.constant 0 : index
      %c0_31 = arith.constant 0 : index
      %91 = vector.load %arg5[%c0_30, %c0_31] : memref<2x1024xi32, #tpu.memory_space<vmem>>, vector<2x1024xi32>
      tpu.vector_store %arg5[%c0_30, %c0_31], %80 {strides = array<i32>} : memref<2x1024xi32, #tpu.memory_space<vmem>>, vector<2x1024xi32>,
    } else {
    }
    %c0_i32_24 = arith.constant 0 : i32
    %84 = arith.cmpi sgt, %arg1, %c0_i32_24 : i32
    %85 = arith.extui %84 : i1 to i32
    %c0_i32_25 = arith.constant 0 : i32
    %86 = arith.cmpi ne, %85, %c0_i32_25 : i32
    scf.if %86 {
      %c0_28 = arith.constant 0 : index
      %c0_29 = arith.constant 0 : index
      %90 = vector.load %arg4[%c0_28, %c0_29] : memref<2x1024xf32, #tpu.memory_space<vmem>>, vector<2x1024xf32>
      %91 = arith.cmpf ogt, %78, %90 : vector<2x1024xf32>
      %92 = arith.cmpf one, %78, %78 : vector<2x1024xf32>
      %93 = arith.cmpf one, %90, %90 : vector<2x1024xf32>
      %cst_30 = arith.constant dense<true> : vector<2x1024xi1>
      %94 = arith.xori %93, %cst_30 : vector<2x1024xi1>
      %95 = arith.andi %92, %94 : vector<2x1024xi1>
      %96 = arith.ori %91, %95 : vector<2x1024xi1>
      %97 = arith.select %96, %78, %90 : vector<2x1024xi1>, vector<2x1024xf32>
      %c0_31 = arith.constant 0 : index
      %c0_32 = arith.constant 0 : index
      %98 = vector.load %arg4[%c0_31, %c0_32] : memref<2x1024xf32, #tpu.memory_space<vmem>>, vector<2x1024xf32>
      tpu.vector_store %arg4[%c0_31, %c0_32], %97 {strides = array<i32>} : memref<2x1024xf32, #tpu.memory_space<vmem>>, vector<2x1024xf32>,
      %99 = vector.broadcast %0 : i32 to vector<2x1024xi32>
      %100 = arith.addi %80, %99 : vector<2x1024xi32>
      %c0_33 = arith.constant 0 : index
      %c0_34 = arith.constant 0 : index
      %101 = vector.load %arg5[%c0_33, %c0_34] : memref<2x1024xi32, #tpu.memory_space<vmem>>, vector<2x1024xi32>
      %102 = arith.select %96, %100, %101 : vector<2x1024xi1>, vector<2x1024xi32>
      %c0_35 = arith.constant 0 : index
      %c0_36 = arith.constant 0 : index
      %103 = vector.load %arg5[%c0_35, %c0_36] : memref<2x1024xi32, #tpu.memory_space<vmem>>, vector<2x1024xi32>
      tpu.vector_store %arg5[%c0_35, %c0_36], %102 {strides = array<i32>} : memref<2x1024xi32, #tpu.memory_space<vmem>>, vector<2x1024xi32>,
    } else {
    }
    %c0_i32_26 = arith.constant 0 : i32
    %87 = arith.cmpi eq, %arg1, %c0_i32_26 : i32
    %88 = arith.extui %87 : i1 to i32
    %c0_i32_27 = arith.constant 0 : i32
    %89 = arith.cmpi ne, %88, %c0_i32_27 : i32
    scf.if %89 {
      %c0_28 = arith.constant 0 : index
      %c0_29 = arith.constant 0 : index
      %90 = vector.load %arg5[%c0_28, %c0_29] : memref<2x1024xi32, #tpu.memory_space<vmem>>, vector<2x1024xi32>
      %c0_30 = arith.constant 0 : index
      %c0_31 = arith.constant 0 : index
      %c0_32 = arith.constant 0 : index
      %91 = vector.load %arg3[%c0_30, %c0_31, %c0_32] : memref<1x2x1024xi32, #tpu.memory_space<vmem>>, vector<1x2x1024xi32>
      %92 = vector.shape_cast %91 : vector<1x2x1024xi32> to vector<2x1024xi32>
      %93 = vector.shape_cast %90 : vector<2x1024xi32> to vector<1x2x1024xi32>
      tpu.vector_store %arg3[%c0_30, %c0_31, %c0_32], %93 {strides = array<i32>} : memref<1x2x1024xi32, #tpu.memory_space<vmem>>, vector<1x2x1024xi32>,
    } else {
    }
    return
  }
  func.func @transform_0(%arg0: i32, %arg1: i32) -> (i32, i32, i32) {
    %c0_i32 = arith.constant 0 : i32
    %c0_i32_0 = arith.constant 0 : i32
    return %arg1, %arg0, %c0_i32 : i32, i32, i32
  }
  func.func @transform_1(%arg0: i32, %arg1: i32) -> (i32, i32, i32) {
    %c0_i32 = arith.constant 0 : i32
    %c0_i32_0 = arith.constant 0 : i32
    %c0_i32_1 = arith.constant 0 : i32
    return %c0_i32, %arg0, %c0_i32_0 : i32, i32, i32
  }
}

</mosaic_0001>

<llo_original>
// kernel: tpu_custom_call.1
$region0: #{tpu_custom_call.1}
  #allocation0 [shape = 'u32[]', space=smem, size = 0x4, offset = 0x4, fixed_abs, tag = 'smem constant byte address 0x4 - core index']
  #allocation1 [shape = 'u32[144,128]{1,0:T(1,128)}', space=vmem, size = 0x12000, scoped, tag = 'internal scratch']
  #allocation2 [shape = 'f32[2,1024]{1,0:T(2,128)}', space=vmem, size = 0x2000, scoped, tag = 'scratch operand']
  #allocation3 [shape = 's32[2,1024]{1,0:T(2,128)}', space=vmem, size = 0x2000, scoped, tag = 'scratch operand']
  %s0 = inlined_call_operand.hbm [shape: f32[8,2,1024], index: 0, kind: input, shape index: {}]
  %s1 = inlined_call_operand.hbm [shape: s32[1,2,1024], index: 1, kind: output, shape index: {}]
  %s2 = sld [smem:[#allocation0]]
  $region30: #{tpu_custom_call.1} parent=0
    _
  %s4 = ssub.s32 1, %s2
  %s5 = scalar_select 0, %s4, %s2
  $region1: #{tpu_custom_call.1} parent=0
    #allocation4 [shape = 'u8[65536]{0}', space=vmem, size = 0x10000, scoped, tag = 'input window, operand 0, single buffered']
    #allocation5 [shape = 's32[1]{0}', space=sflag, size = 0x4, scoped, tag = 'scoped memory for tpu_custom_call.1']
    #allocation6 [shape = 's32[1]{0}', space=sflag, size = 0x4, scoped, tag = 'scoped memory for tpu_custom_call.1']
    #allocation7 [shape = 'u8[8192]{0}', space=vmem, size = 0x2000, scoped, tag = 'output window, operand 0, single buffered']
    %6 = vsyncpa [#allocation5], 0
    %7 = vsyncpa [#allocation6], 0
    // Predicated region
    $region2: #{tpu_custom_call.1} parent=1 // pred_check
      _
    $region3: #{tpu_custom_call.1} parent=1 // pred_check_branch
      %9 = sbr.rel (0) target = $region5
    $region4: #{tpu_custom_call.1} parent=1 // pred_region
      %s11 = ssub.s32 2048, 2048
      %12 = vsyncadd [#allocation5], %s11
      %s13 = sshll.u32 [#allocation4], 4
      %s14 = int_to_ptr.vmem [resolvable:$true] %s13
      %19 = dma.hbm_to_vmem [thread:$0]  %s0, 2048, %s14, [#allocation5], 256, 256, 16
    $region5: #{tpu_custom_call.1} parent=1 // pred_fallthru
      _
    // Predicated region
    $region6: #{tpu_custom_call.1} parent=1 // pred_check
      _
    $region7: #{tpu_custom_call.1} parent=1 // pred_check_branch
      %21 = sbr.rel (0) target = $region9
    $region8: #{tpu_custom_call.1} parent=1 // pred_region
      %22 = dma.done [#allocation5], 2048
    $region9: #{tpu_custom_call.1} parent=1 // pred_fallthru
      _
    %s23 = smul.u32 0, 8
    %v24 = vld [vmem:[#allocation4] sm:$0xff]
    %v25 = vld [vmem:[#allocation4 + $0x8] sm:$0xff]
    %s26 = scalar_lea.vmem [#allocation4], 16
    %v27 = vld [vmem:[%s26] sm:$0xff]
    %v28 = vld [vmem:[%s26 + $0x8] sm:$0xff]
    %vm29 = vcmp.gt.f32.partialorder %v27, %v24
    %vm30 = vcmp.gt.f32.partialorder %v28, %v25
    %vm31 = vcmp.ne.f32.partialorder %v27, %v27
    %vm32 = vcmp.ne.f32.partialorder %v28, %v28
    %vm33 = vcmp.ne.f32.partialorder %v24, %v24
    %vm34 = vcmp.ne.f32.partialorder %v25, %v25
    %vm35 = vmxor %vm33, 1
    %vm36 = vmxor %vm34, 1
    %vm37 = vmand %vm31, %vm35
    %vm38 = vmand %vm32, %vm36
    %vm39 = vmor %vm29, %vm37
    %vm40 = vmor %vm30, %vm38
    %v41 = vsel %vm39, %v27, %v24
    %v42 = vsel %vm40, %v28, %v25
    %v43 = vsel %vm39, 1, 0
    %v44 = vsel %vm40, 1, 0
    %s45 = scalar_lea.vmem [#allocation4], 32
    %v46 = vld [vmem:[%s45] sm:$0xff]
    %v47 = vld [vmem:[%s45 + $0x8] sm:$0xff]
    %vm48 = vcmp.gt.f32.partialorder %v46, %v41
    %vm49 = vcmp.gt.f32.partialorder %v47, %v42
    %vm50 = vcmp.ne.f32.partialorder %v46, %v46
    %vm51 = vcmp.ne.f32.partialorder %v47, %v47
    %vm52 = vcmp.ne.f32.partialorder %v41, %v41
    %vm53 = vcmp.ne.f32.partialorder %v42, %v42
    %vm54 = vmxor %vm52, 1
    %vm55 = vmxor %vm53, 1
    %vm56 = vmand %vm50, %vm54
    %vm57 = vmand %vm51, %vm55
    %vm58 = vmor %vm48, %vm56
    %vm59 = vmor %vm49, %vm57
    %v60 = vsel %vm58, %v46, %v41
    %v61 = vsel %vm59, %v47, %v42
    %v62 = vsel %vm58, 2, %v43
    %v63 = vsel %vm59, 2, %v44
    %s64 = scalar_lea.vmem [#allocation4], 48
    %v65 = vld [vmem:[%s64] sm:$0xff]
    %v66 = vld [vmem:[%s64 + $0x8] sm:$0xff]
    %vm67 = vcmp.gt.f32.partialorder %v65, %v60
    %vm68 = vcmp.gt.f32.partialorder %v66, %v61
    %vm69 = vcmp.ne.f32.partialorder %v65, %v65
    %vm70 = vcmp.ne.f32.partialorder %v66, %v66
    %vm71 = vcmp.ne.f32.partialorder %v60, %v60
    %vm72 = vcmp.ne.f32.partialorder %v61, %v61
    %vm73 = vmxor %vm71, 1
    %vm74 = vmxor %vm72, 1
    %vm75 = vmand %vm69, %vm73
    %vm76 = vmand %vm70, %vm74
    %vm77 = vmor %vm67, %vm75
    %vm78 = vmor %vm68, %vm76
    %v79 = vsel %vm77, %v65, %v60
    %v80 = vsel %vm78, %v66, %v61
    %v81 = vsel %vm77, 3, %v62
    %v82 = vsel %vm78, 3, %v63
    %s83 = scalar_lea.vmem [#allocation4], 64
    %v84 = vld [vmem:[%s83] sm:$0xff]
    %v85 = vld [vmem:[%s83 + $0x8] sm:$0xff]
    %vm86 = vcmp.gt.f32.partialorder %v84, %v79
    %vm87 = vcmp.gt.f32.partialorder %v85, %v80
    %vm88 = vcmp.ne.f32.partialorder %v84, %v84
    %vm89 = vcmp.ne.f32.partialorder %v85, %v85
    %vm90 = vcmp.ne.f32.partialorder %v79, %v79
    %vm91 = vcmp.ne.f32.partialorder %v80, %v80
    %vm92 = vmxor %vm90, 1
    %vm93 = vmxor %vm91, 1
    %vm94 = vmand %vm88, %vm92
    %vm95 = vmand %vm89, %vm93
    %vm96 = vmor %vm86, %vm94
    %vm97 = vmor %vm87, %vm95
    %v98 = vsel %vm96, %v84, %v79
    %v99 = vsel %vm97, %v85, %v80
    %v100 = vsel %vm96, 4, %v81
    %v101 = vsel %vm97, 4, %v82
    %s102 = scalar_lea.vmem [#allocation4], 80
    %v103 = vld [vmem:[%s102] sm:$0xff]
    %v104 = vld [vmem:[%s102 + $0x8] sm:$0xff]
    %vm105 = vcmp.gt.f32.partialorder %v103, %v98
    %vm106 = vcmp.gt.f32.partialorder %v104, %v99
    %vm107 = vcmp.ne.f32.partialorder %v103, %v103
    %vm108 = vcmp.ne.f32.partialorder %v104, %v104
    %vm109 = vcmp.ne.f32.partialorder %v98, %v98
    %vm110 = vcmp.ne.f32.partialorder %v99, %v99
    %vm111 = vmxor %vm109, 1
    %vm112 = vmxor %vm110, 1
    %vm113 = vmand %vm107, %vm111
    %vm114 = vmand %vm108, %vm112
    %vm115 = vmor %vm105, %vm113
    %vm116 = vmor %vm106, %vm114
    %v117 = vsel %vm115, %v103, %v98
    %v118 = vsel %vm116, %v104, %v99
    %v119 = vsel %vm115, 5, %v100
    %v120 = vsel %vm116, 5, %v101
    %s121 = scalar_lea.vmem [#allocation4], 96
    %v122 = vld [vmem:[%s121] sm:$0xff]
    %v123 = vld [vmem:[%s121 + $0x8] sm:$0xff]
    %vm124 = vcmp.gt.f32.partialorder %v122, %v117
    %vm125 = vcmp.gt.f32.partialorder %v123, %v118
    %vm126 = vcmp.ne.f32.partialorder %v122, %v122
    %vm127 = vcmp.ne.f32.partialorder %v123, %v123
    %vm128 = vcmp.ne.f32.partialorder %v117, %v117
    %vm129 = vcmp.ne.f32.partialorder %v118, %v118
    %vm130 = vmxor %vm128, 1
    %vm131 = vmxor %vm129, 1
    %vm132 = vmand %vm126, %vm130
    %vm133 = vmand %vm127, %vm131
    %vm134 = vmor %vm124, %vm132
    %vm135 = vmor %vm125, %vm133
    %v136 = vsel %vm134, %v122, %v117
    %v137 = vsel %vm135, %v123, %v118
    %v138 = vsel %vm134, 6, %v119
    %v139 = vsel %vm135, 6, %v120
    %s140 = scalar_lea.vmem [#allocation4], 112
    %v141 = vld [vmem:[%s140] sm:$0xff]
    %v142 = vld [vmem:[%s140 + $0x8] sm:$0xff]
    %vm143 = vcmp.gt.f32.partialorder %v141, %v136
    %vm144 = vcmp.gt.f32.partialorder %v142, %v137
    %vm145 = vcmp.ne.f32.partialorder %v141, %v141
    %vm146 = vcmp.ne.f32.partialorder %v142, %v142
    %vm147 = vcmp.ne.f32.partialorder %v136, %v136
    %vm148 = vcmp.ne.f32.partialorder %v137, %v137
    %vm149 = vmxor %vm147, 1
    %vm150 = vmxor %vm148, 1
    %vm151 = vmand %vm145, %vm149
    %vm152 = vmand %vm146, %vm150
    %vm153 = vmor %vm143, %vm151
    %vm154 = vmor %vm144, %vm152
    %v155 = vsel %vm153, %v141, %v136
    %v156 = vsel %vm154, %v142, %v137
    %v157 = vsel %vm153, 7, %v138
    %v158 = vsel %vm154, 7, %v139
    %p159 = scmp.eq.s32.totalorder 0, 0
    // Predicated region
    $region10: #{tpu_custom_call.1} parent=1 // pred_check
      %p160 = pneg %p159
    $region11: #{tpu_custom_call.1} parent=1 // pred_check_branch
      %162 = sbr.rel (%p160) target = $region13
    $region12: #{tpu_custom_call.1} parent=1 // pred_region
      %163 = vst [vmem:[#allocation2] sm:$0xff] %v155
      %164 = vst [vmem:[#allocation2 + $0x8] sm:$0xff] %v156
      %165 = vst [vmem:[#allocation3] sm:$0xff] %v157
      %166 = vst [vmem:[#allocation3 + $0x8] sm:$0xff] %v158
    $region13: #{tpu_custom_call.1} parent=1 // pred_fallthru
      _
    %p167 = scmp.gt.s32.totalorder 0, 0
    // Predicated region
    $region14: #{tpu_custom_call.1} parent=1 // pred_check
      %p168 = pneg %p167
    $region15: #{tpu_custom_call.1} parent=1 // pred_check_branch
      %170 = sbr.rel (%p168) target = $region17
    $region16: #{tpu_custom_call.1} parent=1 // pred_region
      %v171 = vld [vmem:[#allocation2] sm:$0xff]
      %v172 = vld [vmem:[#allocation2 + $0x8] sm:$0xff]
      %vm173 = vcmp.gt.f32.partialorder %v155, %v171
      %vm174 = vcmp.gt.f32.partialorder %v156, %v172
      %vm175 = vcmp.ne.f32.partialorder %v155, %v155
      %vm176 = vcmp.ne.f32.partialorder %v156, %v156
      %vm177 = vcmp.ne.f32.partialorder %v171, %v171
      %vm178 = vcmp.ne.f32.partialorder %v172, %v172
      %vm179 = vmxor %vm177, 1
      %vm180 = vmxor %vm178, 1
      %vm181 = vmand %vm175, %vm179
      %vm182 = vmand %vm176, %vm180
      %vm183 = vmor %vm173, %vm181
      %vm184 = vmor %vm174, %vm182
      %v185 = vsel %vm183, %v155, %v171
      %v186 = vsel %vm184, %v156, %v172
      %187 = vst [vmem:[#allocation2] sm:$0xff] %v185
      %188 = vst [vmem:[#allocation2 + $0x8] sm:$0xff] %v186
      %v189 = vstv %s23
      %v190 = vadd.s32 %v157, %v189
      %v191 = vadd.s32 %v158, %v189
      %v192 = vld [vmem:[#allocation3] sm:$0xff]
      %v193 = vld [vmem:[#allocation3 + $0x8] sm:$0xff]
      %v194 = vsel %vm183, %v190, %v192
      %v195 = vsel %vm184, %v191, %v193
      %196 = vst [vmem:[#allocation3] sm:$0xff] %v194
      %197 = vst [vmem:[#allocation3 + $0x8] sm:$0xff] %v195
    $region17: #{tpu_custom_call.1} parent=1 // pred_fallthru
      _
    // Predicated region
    $region18: #{tpu_custom_call.1} parent=1 // pred_check
      %p198 = pneg %p159
    $region19: #{tpu_custom_call.1} parent=1 // pred_check_branch
      %200 = sbr.rel (%p198) target = $region21
    $region20: #{tpu_custom_call.1} parent=1 // pred_region
      %v201 = vld [vmem:[#allocation3] sm:$0xff]
      %v202 = vld [vmem:[#allocation3 + $0x8] sm:$0xff]
      %203 = vst [vmem:[#allocation7] sm:$0xff] %v201
      %204 = vst [vmem:[#allocation7 + $0x8] sm:$0xff] %v202
    $region21: #{tpu_custom_call.1} parent=1 // pred_fallthru
      _
    // Predicated region
    $region22: #{tpu_custom_call.1} parent=1 // pred_check
      _
    $region23: #{tpu_custom_call.1} parent=1 // pred_check_branch
      %206 = sbr.rel (0) target = $region25
    $region24: #{tpu_custom_call.1} parent=1 // pred_region
      %s208 = ssub.s32 256, 256
      %209 = vsyncadd [#allocation6], %s208
      %s211 = sshll.u32 [#allocation7], 4
      %s212 = int_to_ptr.vmem [resolvable:$true] %s211
      %214 = dma.vmem_to_hbm [thread:$0]  %s212, 256, %s1, [#allocation6]
    $region25: #{tpu_custom_call.1} parent=1 // pred_fallthru
      _
    // Predicated region
    $region26: #{tpu_custom_call.1} parent=1 // pred_check
      _
    $region27: #{tpu_custom_call.1} parent=1 // pred_check_branch
      %216 = sbr.rel (0) target = $region29
    $region28: #{tpu_custom_call.1} parent=1 // pred_region
      %217 = dma.done [#allocation6], 256
    $region29: #{tpu_custom_call.1} parent=1 // pred_fallthru
      _
    %218 = vsyncpa [#allocation5], 1
    %219 = vsyncpa [#allocation6], 1

</llo_original>
